<compile_context>
chip_gen: v7x
topology: tpu7x:2x2x1
jax: 0.10.0
libtpu: 0.0.40
codegen_flags: <defaults>
</compile_context>

<pallas_src>
import functools

import jax
import jax.numpy as jnp
from jax.experimental import pallas as pl
from jax.experimental.pallas import tpu as pltpu


def _round_up(x, m):
    return ((x + m - 1) // m) * m


def _largest_aligned_divisor(total, cap, align=128):
    """Largest d with d % align == 0, total % d == 0, d <= cap (assumes align | total)."""
    m = total // align
    cap_q = max(1, cap // align)
    best = 1
    i = 1
    while i * i <= m:
        if m % i == 0:
            for q in (i, m // i):
                if q <= cap_q and q > best:
                    best = q
        i += 1
    return best * align


@functools.lru_cache(maxsize=1)
def _vmem_limit_bytes():
    try:
        cap = int(pltpu.get_tpu_info().vmem_capacity_bytes)
    except Exception:
        cap = 64 * 1024 * 1024          # conservative (v7x per-TC VMEM)
    return int(min(max(cap * 3 // 4, 32 * 1024 * 1024), 96 * 1024 * 1024))


def _motif_kernel(logp_ref, patch_ref, keep_ref, out_ref):
    """One grid step.

    logp_ref  : (TN, CKp)   f32  log-PWM rows for this motif tile
    patch_ref : (CKp, TBL)  bf16 im2col mask patches (lane axis = flattened b*L_pad + l)
    keep_ref  : (1, TBL)    f32  1.0 on valid output columns, 0.0 on the K-1 / L padding
    out_ref   : (TN, TBL)   f32  exp(conv) * keep, one dense lane-aligned store
    """
    acc = jnp.dot(logp_ref[...], patch_ref[...].astype(jnp.float32),
                  preferred_element_type=jnp.float32)
    out_ref[...] = (jnp.exp(acc) * keep_ref[...]).astype(out_ref.dtype)


@jax.jit
def motif_collection_forward(coded_sequences, embeddings_sequences, mask_tensor, weights):
    """JAX/Pallas equivalent of motif_collection.forward(items), no_post_process=False.

    Returns (num_motifs, batch, seq_len) float32 == torch.transpose(emissions, 0, 1).
    """
    del coded_sequences, embeddings_sequences      # only shapes are consulted in torch fwd
    B, L, C = mask_tensor.shape                    # C == 4 nucleotide channels
    num, Cw, K = weights.shape
    assert Cw == C
    CK = C * K

    # ---------------- wrapper-side prep (hoisted off the hot path) ----------------
    CK_p = _round_up(CK, 8)
    L_p = _round_up(L, 128)                        # lane-dense output stores
    BL = B * L_p

    # motif-axis padding / tile selection (pad-to-tile, never fall to tiny tiles)
    num_p = _round_up(num, 8)
    if num_p <= 256:
        TN = num_p
    else:
        num_p = _round_up(num, 64)
        TN = 64
        for cand in (256, 128, 64):
            if num_p % cand == 0:
                TN = cand
                break

    # log-PWM, flattened to row order c*K + k, zero-padded to (num_p, CK_p)
    logp = jax.nn.log_softmax(weights.astype(jnp.float32), axis=1)       # (num, C, K)
    logp_flat = logp.reshape(num, CK)
    if num_p != num or CK_p != CK:
        logp_flat = jnp.pad(logp_flat, ((0, num_p - num), (0, CK_p - CK)))

    # im2col: patches[c*K + k, b*L_p + l] = mask[b, l-(K-1)+k, c]  (0 when out of range)
    # TODO(synk): for very small motif counts / large K, an in-kernel halo im2col would
    # avoid materializing this K-x inflated copy of the mask in HBM.
    mask_cl = jnp.transpose(mask_tensor.astype(jnp.float32), (0, 2, 1))  # (B, C, L)
    mask_cl = jnp.pad(mask_cl, ((0, 0), (0, 0), (K - 1, L_p - L)))       # (B, C, L_p+K-1)
    patches = jnp.stack([mask_cl[:, :, k:k + L_p] for k in range(K)], axis=2)  # (B,C,K,L_p)
    patches = patches.reshape(B, CK, L_p)
    patches = jnp.transpose(patches, (1, 0, 2)).reshape(CK, BL)          # (CK, B*L_p)
    if CK_p != CK:
        patches = jnp.pad(patches, ((0, CK_p - CK), (0, 0)))
    patches = patches.astype(jnp.bfloat16)                               # 0/1 exact in bf16

    # valid-column mask: zero the first K-1 positions of each sequence and the L padding
    pos = jnp.arange(L_p)
    keep_row = ((pos >= (K - 1)) & (pos < L)).astype(jnp.float32)        # (L_p,)
    keep = jnp.broadcast_to(keep_row[None, :], (B, L_p)).reshape(1, BL)  # (1, B*L_p)

    # ---------------- tile / grid selection ----------------
    vmem_limit = _vmem_limit_bytes()
    out_cap = min(8 * 1024 * 1024, vmem_limit // 4)       # per-block caps (double-buffered)
    patch_cap = min(4 * 1024 * 1024, vmem_limit // 8)
    tbl_cap = max(128, min(out_cap // (TN * 4), patch_cap // (CK_p * 2)))
    TBL = _largest_aligned_divisor(BL, tbl_cap)

    grid_bl = BL // TBL
    grid_n = num_p // TN
    # keep both v7x TensorCores busy: never collapse to a single grid step
    if grid_bl * grid_n == 1 and TBL >= 256 and (TBL // 2) % 128 == 0:
        TBL //= 2
        grid_bl = BL // TBL

    out2d = pl.pallas_call(
        _motif_kernel,
        out_shape=jax.ShapeDtypeStruct((num_p, BL), jnp.float32),
        grid_spec=pltpu.PrefetchScalarGridSpec(
            num_scalar_prefetch=0,
            # motif axis innermost: the large patches / keep blocks keep the same block
            # index across it (no re-DMA); only the tiny logp tile is re-fetched.
            grid=(grid_bl, grid_n),
            in_specs=[
                pl.BlockSpec((TN, CK_p), lambda bl, n: (n, 0)),
                pl.BlockSpec((CK_p, TBL), lambda bl, n: (0, bl)),
                pl.BlockSpec((1, TBL), lambda bl, n: (0, bl)),
            ],
            out_specs=pl.BlockSpec((TN, TBL), lambda bl, n: (n, bl)),
        ),
        compiler_params=pltpu.CompilerParams(
            dimension_semantics=("parallel", "parallel"),
            vmem_limit_bytes=vmem_limit),
    )(logp_flat, patches, keep)

    out = out2d.reshape(num_p, B, L_p)          # free metadata reshape to (num_p, B, L_p)
    if num_p != num or L_p != L:
        out = out[:num, :, :L]
    return out


if __name__ == "__main__":
    key = jax.random.PRNGKey(0)
    k_idx, k_emb, k_w = jax.random.split(key, 3)

    batch, seq_len, num_motifs, length = 2, 16, 8, 5

    # deterministic synthetic inputs
    base_idx = jax.random.randint(k_idx, (batch, seq_len), 0, 4)
    mask_tensor = jax.nn.one_hot(base_idx, 4, dtype=jnp.float32)          # (B, L, 4)
    coded_sequences = mask_tensor                                          # (B, L, 4)
    embeddings_sequences = jax.random.normal(k_emb, (batch, seq_len, 8), jnp.float32)
    weights = 0.1 * jax.random.normal(k_w, (num_motifs, 4, length), jnp.float32)

    out = motif_collection_forward(coded_sequences, embeddings_sequences,
                                   mask_tensor, weights)
    out = jax.block_until_ready(out)

    # pure-JAX reference for a correctness check
    logp_ref = jax.nn.log_softmax(weights, axis=1)                         # (num, 4, K)
    T = seq_len - length + 1
    ref = jnp.zeros((batch, T, num_motifs), jnp.float32)
    for k in range(length):
        ref = ref + jnp.einsum('blc,nc->bln', mask_tensor[:, k:k + T, :], logp_ref[:, :, k])
    ref = jnp.exp(ref)
    ref = jnp.concatenate(
        [jnp.zeros((batch, length - 1, num_motifs), jnp.float32), ref], axis=1)
    ref = jnp.transpose(ref, (2, 0, 1))                                    # (num, B, L)

    assert out.shape == (num_motifs, batch, seq_len), out.shape
    assert out.dtype == jnp.float32
    assert jnp.allclose(out, ref, rtol=1e-5, atol=1e-5), float(jnp.max(jnp.abs(out - ref)))

    print("KERNEL_OK")
</pallas_src>

<mosaic_0001>
module attributes {stable_mosaic.version = 11 : i64} {
  func.func @_motif_kernel(%arg0: i32, %arg1: i32, %arg2: memref<8x24xf32, #tpu.memory_space<vmem>>, %arg3: memref<24x128xbf16, #tpu.memory_space<vmem>>, %arg4: memref<1x128xf32, #tpu.memory_space<vmem>>, %arg5: memref<8x128xf32, #tpu.memory_space<vmem>>) attributes {dimension_semantics = [#tpu.dimension_semantics<parallel>, #tpu.dimension_semantics<parallel>], iteration_bounds = array<i64: 2, 1>, scalar_prefetch = 0 : i64, scratch_operands = 0 : i64, tpu.core_type = #tpu.core_type<tc>, window_params = [{transform_indices = @transform_0, window_bounds = array<i64: 8, 24>}, {transform_indices = @transform_1, window_bounds = array<i64: 24, 128>}, {transform_indices = @transform_2, window_bounds = array<i64: 1, 128>}, {transform_indices = @transform_3, window_bounds = array<i64: 8, 128>}]} {
    %c0 = arith.constant 0 : index
    %c0_0 = arith.constant 0 : index
    %0 = vector.load %arg2[%c0, %c0_0] : memref<8x24xf32, #tpu.memory_space<vmem>>, vector<8x24xf32>
    %c0_1 = arith.constant 0 : index
    %c0_2 = arith.constant 0 : index
    %1 = vector.load %arg3[%c0_1, %c0_2] : memref<24x128xbf16, #tpu.memory_space<vmem>>, vector<24x128xbf16>
    %2 = arith.extf %1 : vector<24x128xbf16> to vector<24x128xf32>
    %cst = arith.constant dense<0.000000e+00> : vector<8x128xf32>
    %3 = tpu.matmul %0, %2, %cst {dimension_numbers = #tpu.dot_dimension_numbers<[1], [0], [0], [1], [0, 0, 1, 1], [], []>} : vector<8x24xf32>, vector<24x128xf32>, vector<8x128xf32> -> vector<8x128xf32>
    %4 = math.exp %3 : vector<8x128xf32>
    %c0_3 = arith.constant 0 : index
    %c0_4 = arith.constant 0 : index
    %5 = vector.load %arg4[%c0_3, %c0_4] : memref<1x128xf32, #tpu.memory_space<vmem>>, vector<1x128xf32>
    %6 = vector.broadcast %5 : vector<1x128xf32> to vector<8x128xf32>
    %7 = arith.mulf %4, %6 : vector<8x128xf32>
    %c0_5 = arith.constant 0 : index
    %c0_6 = arith.constant 0 : index
    %8 = vector.load %arg5[%c0_5, %c0_6] : memref<8x128xf32, #tpu.memory_space<vmem>>, vector<8x128xf32>
    tpu.vector_store %arg5[%c0_5, %c0_6], %7 {strides = array<i32>} : memref<8x128xf32, #tpu.memory_space<vmem>>, vector<8x128xf32>,
    return
  }
  func.func @transform_0(%arg0: i32, %arg1: i32) -> (i32, i32) {
    %c0_i32 = arith.constant 0 : i32
    %c0_i32_0 = arith.constant 0 : i32
    return %arg1, %c0_i32 : i32, i32
  }
  func.func @transform_1(%arg0: i32, %arg1: i32) -> (i32, i32) {
    %c0_i32 = arith.constant 0 : i32
    %c0_i32_0 = arith.constant 0 : i32
    return %c0_i32, %arg0 : i32, i32
  }
  func.func @transform_2(%arg0: i32, %arg1: i32) -> (i32, i32) {
    %c0_i32 = arith.constant 0 : i32
    %c0_i32_0 = arith.constant 0 : i32
    return %c0_i32, %arg0 : i32, i32
  }
  func.func @transform_3(%arg0: i32, %arg1: i32) -> (i32, i32) {
    %c0_i32 = arith.constant 0 : i32
    return %arg1, %arg0 : i32, i32
  }
}

</mosaic_0001>

<llo_original>
// kernel: motif_collection_forward.1
$region0: #{motif_collection_forward.1}
  #allocation0 [shape = 'u32[]', space=smem, size = 0x4, offset = 0x4, fixed_abs, tag = 'smem constant byte address 0x4 - core index']
  #allocation1 [shape = 'u32[144,128]{1,0:T(1,128)}', space=vmem, size = 0x12000, scoped, tag = 'internal scratch']
  %s0 = inlined_call_operand.vmem [shape: f32[8,24], index: 0, kind: input, shape index: {}]
  %s1 = inlined_call_operand.vmem [shape: bf16[24,256], index: 1, kind: input, shape index: {}]
  %s2 = inlined_call_operand.vmem [shape: f32[1,256], index: 2, kind: input, shape index: {}]
  %s3 = inlined_call_operand.vmem [shape: f32[8,256], index: 3, kind: output, shape index: {}]
  %s4 = sld [smem:[#allocation0]]
  $region86: #{motif_collection_forward.1} parent=0
    _
  %s6 = ssub.s32 1, %s4
  %s7 = scalar_select 0, %s6, %s4
  $region1: #{motif_collection_forward.1} parent=0
    #allocation2 [shape = 'u8[12288]{0}', space=vmem, size = 0x3000, scoped, tag = 'input window, operand 1']
    loop: start=0, step=1, limit=4
    $region2: #{motif_collection_forward.1} parent=1 // loop_pre_header
      _
    $region3: #{motif_collection_forward.1} parent=1 // loop_header
      %s9 = sphi 0, %s13
      %p10 = scmp.ge.s32.totalorder %s9, 4
      %s16 = sphi 0, %s28
      %s17 = sphi 0, %s24
      %s18 = sphi 0, %s16
      %s19 = sphi 0, %s17
      %s20 = sphi 0, %s18
      %s21 = sphi 0, %s19
      %s31 = sphi 0, %s33
      %s34 = sphi 0, %s31
      %s35 = sphi 0, %s34
      %s51 = sphi 0, %s35
      %s57 = sphi 0, %s59
      %s60 = sphi 0, %s57
      %s61 = sphi 0, %s60
      %s77 = sphi 0, %s61
      %s83 = sphi 0, %s85
      %s86 = sphi 0, %s83
      %s87 = sphi 0, %s86
      %s103 = sphi 0, %s87
      %s111 = sphi 0, %s113
      %s114 = sphi 0, %s111
      %s115 = sphi 0, %s114
      %s131 = sphi 0, %s115
    $region4: #{motif_collection_forward.1} parent=1 // loop_header_branch
      %12 = sbr.rel (%p10) target = $region8
    $region5: #{motif_collection_forward.1} parent=1 // loop_body
      %s14 = ssub.s32 %s9, 1
      %s15 = ssub.s32 %s9, 2
      %s22 = sadd.s32 1, %s17
      %p23 = scmp.ge.s32.totalorder %s22, 1
      %s24 = scalar_select %p23, 0, %s22
      %s25 = sadd.s32 1, %s16
      %s26 = scalar_select %p23, %s25, %s16
      %p27 = scmp.ge.s32.totalorder %s26, 2
      %s28 = scalar_select %p27, 0, %s26
      %s29 = ssub.s32 %s17, %s24
      %p30 = scmp.eq.s32.totalorder %s29, 0
      %s32 = sadd.s32 %s31, 1
      %s33 = scalar_select %p30, %s31, %s32
      %p36 = pneg %p30
      %p37 = scmp.eq.s32.totalorder %s9, 1
      %p38 = por %p36, %p37
      %p39 = scmp.ne.s32.totalorder %s31, %s34
      %p40 = scmp.eq.s32.totalorder %s9, 0
      %p41 = por %p39, %p40
      %p42 = scmp.ne.s32.totalorder %s31, %s34
      %p43 = scmp.eq.s32.totalorder %s14, 1
      %p44 = por %p42, %p43
      %p45 = scmp.ne.s32.totalorder %s34, %s35
      %p46 = scmp.eq.s32.totalorder %s14, 0
      %p47 = por %p45, %p46
      %p48 = scmp.ne.s32.totalorder %s34, %s35
      %p49 = scmp.eq.s32.totalorder %s15, 1
      %p50 = por %p48, %p49
      %p52 = scmp.ne.s32.totalorder %s35, %s51
      %p53 = scmp.eq.s32.totalorder %s15, 0
      %p54 = por %p52, %p53
      %s55 = ssub.s32 %s16, %s28
      %p56 = scmp.eq.s32.totalorder %s55, 0
      %s58 = sadd.s32 %s57, 1
      %s59 = scalar_select %p56, %s57, %s58
      %p62 = pneg %p56
      %p63 = scmp.eq.s32.totalorder %s9, 1
      %p64 = por %p62, %p63
      %p65 = scmp.ne.s32.totalorder %s57, %s60
      %p66 = scmp.eq.s32.totalorder %s9, 0
      %p67 = por %p65, %p66
      %p68 = scmp.ne.s32.totalorder %s57, %s60
      %p69 = scmp.eq.s32.totalorder %s14, 1
      %p70 = por %p68, %p69
      %p71 = scmp.ne.s32.totalorder %s60, %s61
      %p72 = scmp.eq.s32.totalorder %s14, 0
      %p73 = por %p71, %p72
      %p74 = scmp.ne.s32.totalorder %s60, %s61
      %p75 = scmp.eq.s32.totalorder %s15, 1
      %p76 = por %p74, %p75
      %p78 = scmp.ne.s32.totalorder %s61, %s77
      %p79 = scmp.eq.s32.totalorder %s15, 0
      %p80 = por %p78, %p79
      %s81 = ssub.s32 %s16, %s28
      %p82 = scmp.eq.s32.totalorder %s81, 0
      %s84 = sadd.s32 %s83, 1
      %s85 = scalar_select %p82, %s83, %s84
      %p88 = pneg %p82
      %p89 = scmp.eq.s32.totalorder %s9, 1
      %p90 = por %p88, %p89
      %p91 = scmp.ne.s32.totalorder %s83, %s86
      %p92 = scmp.eq.s32.totalorder %s9, 0
      %p93 = por %p91, %p92
      %p94 = scmp.ne.s32.totalorder %s83, %s86
      %p95 = scmp.eq.s32.totalorder %s14, 1
      %p96 = por %p94, %p95
      %p97 = scmp.ne.s32.totalorder %s86, %s87
      %p98 = scmp.eq.s32.totalorder %s14, 0
      %p99 = por %p97, %p98
      %p100 = scmp.ne.s32.totalorder %s86, %s87
      %p101 = scmp.eq.s32.totalorder %s15, 1
      %p102 = por %p100, %p101
      %p104 = scmp.ne.s32.totalorder %s87, %s103
      %p105 = scmp.eq.s32.totalorder %s15, 0
      %p106 = por %p104, %p105
      %s107 = ssub.s32 %s17, %s24
      %s108 = ssub.s32 %s16, %s28
      %s109 = sor.u32 %s107, %s108
      %p110 = scmp.eq.s32.totalorder %s109, 0
      %s112 = sadd.s32 %s111, 1
      %s113 = scalar_select %p110, %s111, %s112
      %p116 = pneg %p110
      %p117 = scmp.eq.s32.totalorder %s9, 1
      %p118 = por %p116, %p117
      %p119 = scmp.ne.s32.totalorder %s111, %s114
      %p120 = scmp.eq.s32.totalorder %s9, 0
      %p121 = por %p119, %p120
      %p122 = scmp.ne.s32.totalorder %s111, %s114
      %p123 = scmp.eq.s32.totalorder %s14, 1
      %p124 = por %p122, %p123
      %p125 = scmp.ne.s32.totalorder %s114, %s115
      %p126 = scmp.eq.s32.totalorder %s14, 0
      %p127 = por %p125, %p126
      %p128 = scmp.ne.s32.totalorder %s114, %s115
      %p129 = scmp.eq.s32.totalorder %s15, 1
      %p130 = por %p128, %p129
      %p132 = scmp.ne.s32.totalorder %s115, %s131
      %p133 = scmp.eq.s32.totalorder %s15, 0
      %p134 = por %p132, %p133
      %p135 = scmp.le.s32.totalorder 1, %s9
      %p136 = scmp.lt.s32.totalorder %s9, 3
      %p137 = pnand %p135, %p136
      %p138 = pneg %p137
      // Predicated region
      $region9: #{motif_collection_forward.1} parent=5 // pred_check
        _
      $region10: #{motif_collection_forward.1} parent=5 // pred_check_branch
        %140 = sbr.rel (%p137) target = $region12
      $region11: #{motif_collection_forward.1} parent=5 // pred_region
        %s141 = ssub.s32 %s9, 1
        // Predicated region
        $region13: #{motif_collection_forward.1} parent=11 // pred_check
          %p142 = pneg %p47
        $region14: #{motif_collection_forward.1} parent=11 // pred_check_branch
          %144 = sbr.rel (%p142) target = $region16
        $region15: #{motif_collection_forward.1} parent=11 // pred_region
          %p145 = scmp.lt.s32.totalorder %s19, 0
          %s146 = scalar_select %p145, %s19, 0
          %s147 = smul.addr %s146, 8
          %s148 = scalar_lea.vmem %s0, %s147
        $region16: #{motif_collection_forward.1} parent=11 // pred_fallthru
          _
      $region12: #{motif_collection_forward.1} parent=5 // pred_fallthru
        _
      %p149 = scmp.lt.s32.totalorder %s9, 2
      // Predicated region
      $region17: #{motif_collection_forward.1} parent=5 // pred_check
        %p150 = pneg %p149
      $region18: #{motif_collection_forward.1} parent=5 // pred_check_branch
        %152 = sbr.rel (%p150) target = $region20
      $region19: #{motif_collection_forward.1} parent=5 // pred_region
        // Predicated region
        $region21: #{motif_collection_forward.1} parent=19 // pred_check
          %p153 = pneg %p67
        $region22: #{motif_collection_forward.1} parent=19 // pred_check_branch
          %155 = sbr.rel (%p153) target = $region24
        $region23: #{motif_collection_forward.1} parent=19 // pred_region
          %s156 = sand.u32 %s57, 1
          %s157 = sand.u32 %s57, 1
          %s158 = smul.addr %s157, 12
          %s159 = scalar_lea.vmem [#allocation2], %s158
          %s160 = smul.addr %s16, 4
          %s161 = scalar_lea.vmem %s1, %s160
          // Predicated region
          $region25: #{motif_collection_forward.1} parent=23 // pred_check
            _
          $region26: #{motif_collection_forward.1} parent=23 // pred_check_branch
            %163 = sbr.rel (0) target = $region28
          $region27: #{motif_collection_forward.1} parent=23 // pred_region
            // Predicated region
            $region29: #{motif_collection_forward.1} parent=27 // pred_check
              _
            $region30: #{motif_collection_forward.1} parent=27 // pred_check_branch
              %165 = sbr.rel target = $region32
            $region31: #{motif_collection_forward.1} parent=27 // pred_region
              // Predicated region
              $region44: #{motif_collection_forward.1} parent=31 // pred_check
                _
              $region45: #{motif_collection_forward.1} parent=31 // pred_check_branch
                %184 = sbr.rel (0) target = $region47
              $region46: #{motif_collection_forward.1} parent=31 // pred_region
                loop: start=0, step=1, limit=1
                $region48: #{motif_collection_forward.1} parent=46 // loop_pre_header
                  _
                $region49: #{motif_collection_forward.1} parent=46 // loop_header
                  %s186 = sphi 0, %s190
                  %p187 = scmp.ge.s32.totalorder %s186, 1
                  %s191 = sphi %s161, %s161
                  %s192 = sphi %s159, %s159
                $region50: #{motif_collection_forward.1} parent=46 // loop_header_branch
                  %189 = sbr.rel (%p187) target = $region54
                $region51: #{motif_collection_forward.1} parent=46 // loop_body
                  _
                $region52: #{motif_collection_forward.1} parent=46 // loop_footer
                  %s190 = sadd.s32 1, %s186
                $region53: #{motif_collection_forward.1} parent=46 // loop_footer_branch
                  %185 = sbr.rel target = $region49
                $region54: #{motif_collection_forward.1} parent=46 // loop_exit
                  _
                loop: start=0, step=1, limit=1
                $region55: #{motif_collection_forward.1} parent=46 // loop_pre_header
                  _
                $region56: #{motif_collection_forward.1} parent=46 // loop_header
                  %s195 = sphi 0, %s199
                  %p196 = scmp.ge.s32.totalorder %s195, 1
                  %s200 = sphi %s161, %s161
                  %s201 = sphi %s159, %s159
                $region57: #{motif_collection_forward.1} parent=46 // loop_header_branch
                  %198 = sbr.rel (%p196) target = $region61
                $region58: #{motif_collection_forward.1} parent=46 // loop_body
                  %v202 = vld [vmem:[%s200] sm:$0xf]
                  %203 = vst [vmem:[%s201] sm:$0xf] %v202
                  %v204 = vld [vmem:[%s200 + $0x8] sm:$0xf]
                  %205 = vst [vmem:[%s201 + $0x4] sm:$0xf] %v204
                  %v206 = vld [vmem:[%s200 + $0x10] sm:$0xf]
                  %207 = vst [vmem:[%s201 + $0x8] sm:$0xf] %v206
                $region59: #{motif_collection_forward.1} parent=46 // loop_footer
                  %s199 = sadd.s32 1, %s195
                $region60: #{motif_collection_forward.1} parent=46 // loop_footer_branch
                  %194 = sbr.rel target = $region56
                $region61: #{motif_collection_forward.1} parent=46 // loop_exit
                  _
              $region47: #{motif_collection_forward.1} parent=31 // pred_fallthru
                _
            $region32: #{motif_collection_forward.1} parent=27 // pred_fallthru
              _
            // Predicated region
            $region33: #{motif_collection_forward.1} parent=27 // pred_check
              _
            $region34: #{motif_collection_forward.1} parent=27 // pred_check_branch
              %167 = sbr.rel (0) target = $region36
            $region35: #{motif_collection_forward.1} parent=27 // pred_region
              loop: start=0, step=1, limit=1
              $region37: #{motif_collection_forward.1} parent=35 // loop_pre_header
                _
              $region38: #{motif_collection_forward.1} parent=35 // loop_header
                %s170 = sphi 0, %s174
                %p171 = scmp.ge.s32.totalorder %s170, 1
                %s175 = sphi %s161, %s161
                %s176 = sphi %s159, %s159
              $region39: #{motif_collection_forward.1} parent=35 // loop_header_branch
                %173 = sbr.rel (%p171) target = $region43
              $region40: #{motif_collection_forward.1} parent=35 // loop_body
                %v177 = vld [vmem:[%s175] sm:$0xf]
                %178 = vst [vmem:[%s176] sm:$0xf] %v177
                %v179 = vld [vmem:[%s175 + $0x8] sm:$0xf]
                %180 = vst [vmem:[%s176 + $0x4] sm:$0xf] %v179
                %v181 = vld [vmem:[%s175 + $0x10] sm:$0xf]
                %182 = vst [vmem:[%s176 + $0x8] sm:$0xf] %v181
              $region41: #{motif_collection_forward.1} parent=35 // loop_footer
                %s174 = sadd.s32 1, %s170
              $region42: #{motif_collection_forward.1} parent=35 // loop_footer_branch
                %169 = sbr.rel target = $region38
              $region43: #{motif_collection_forward.1} parent=35 // loop_exit
                _
            $region36: #{motif_collection_forward.1} parent=27 // pred_fallthru
              _
          $region28: #{motif_collection_forward.1} parent=23 // pred_fallthru
            _
          %208 = vnop
        $region24: #{motif_collection_forward.1} parent=19 // pred_fallthru
          _
        // Predicated region
        $region62: #{motif_collection_forward.1} parent=19 // pred_check
          %p209 = pneg %p93
        $region63: #{motif_collection_forward.1} parent=19 // pred_check_branch
          %211 = sbr.rel (%p209) target = $region65
        $region64: #{motif_collection_forward.1} parent=19 // pred_region
          %p212 = scmp.lt.s32.totalorder %s16, 1
          %s213 = scalar_select %p212, %s16, 1
          %s214 = scalar_lea.vmem %s2, %s213
        $region65: #{motif_collection_forward.1} parent=19 // pred_fallthru
          _
      $region20: #{motif_collection_forward.1} parent=5 // pred_fallthru
        _
      %p215 = scmp.le.s32.totalorder 1, %s9
      %p216 = scmp.lt.s32.totalorder %s9, 3
      %p217 = pnand %p215, %p216
      %p218 = pneg %p217
      // Predicated region
      $region66: #{motif_collection_forward.1} parent=5 // pred_check
        _
      $region67: #{motif_collection_forward.1} parent=5 // pred_check_branch
        %220 = sbr.rel (%p217) target = $region69
      $region68: #{motif_collection_forward.1} parent=5 // pred_region
        %s221 = ssub.s32 %s9, 1
        %s222 = sand.u32 %s60, 1
        %s223 = sand.u32 %s60, 1
        %s224 = smul.addr %s223, 12
        %s225 = scalar_lea.vmem [#allocation2], %s224
        // Predicated region
        $region70: #{motif_collection_forward.1} parent=68 // pred_check
          %p226 = pneg %p73
        $region71: #{motif_collection_forward.1} parent=68 // pred_check_branch
          %228 = sbr.rel (%p226) target = $region73
        $region72: #{motif_collection_forward.1} parent=68 // pred_region
          _
        $region73: #{motif_collection_forward.1} parent=68 // pred_fallthru
          _
        %p229 = scmp.lt.s32.totalorder %s19, 0
        %s230 = scalar_select %p229, %s19, 0
        %s231 = smul.addr %s230, 8
        %s232 = scalar_lea.vmem %s0, %s231
        %p233 = pneg %p47
        %p234 = pneg %p44
        %s235 = sand.u32 %s60, 1
        %s236 = sand.u32 %s60, 1
        %s237 = smul.addr %s236, 12
        %s238 = scalar_lea.vmem [#allocation2], %s237
        %p239 = pneg %p73
        %p240 = pneg %p70
        %p241 = scmp.lt.s32.totalorder %s18, 1
        %s242 = scalar_select %p241, %s18, 1
        %s243 = scalar_lea.vmem %s2, %s242
        %p244 = pneg %p99
        %p245 = pneg %p96
        %p246 = pneg %p127
        %p247 = pneg %p124
        %p248 = scmp.lt.s32.totalorder %s19, 0
        %s249 = scalar_select %p248, %s19, 0
        %p250 = scmp.lt.s32.totalorder %s18, 1
        %s251 = scalar_select %p250, %s18, 1
        %s252 = smul.addr %s249, 2
        %s253 = sadd.s32 %s251, %s252
        %s254 = smul.addr %s253, 8
        %s255 = scalar_lea.vmem %s3, %s254
        %p256 = scmp.lt.s32.totalorder %s19, 0
        %s257 = scalar_select %p256, %s19, 0
        %s258 = smul.addr %s257, 8
        %s259 = scalar_lea.vmem %s0, %s258
        %p260 = scmp.lt.s32.totalorder %s18, 1
        %s261 = scalar_select %p260, %s18, 1
        %s262 = scalar_lea.vmem %s2, %s261
        %p263 = scmp.lt.s32.totalorder %s19, 0
        %s264 = scalar_select %p263, %s19, 0
        %p265 = scmp.lt.s32.totalorder %s18, 1
        %s266 = scalar_select %p265, %s18, 1
        %s267 = smul.addr %s264, 2
        %s268 = sadd.s32 %s266, %s267
        %s269 = smul.addr %s268, 8
        %s270 = scalar_lea.vmem %s3, %s269
        %v271 = vld [vmem:[%s259] sm:$0xff]
        %v272 = vld [vmem:[%s225] sm:$0xf]
        %v273 = vld [vmem:[%s225 + $0x4] sm:$0xf]
        %v274 = vld [vmem:[%s225 + $0x8] sm:$0xf]
        %v275 = vunpack.c.l.bf16 %v272
        %v276 = vunpack.c.l.bf16 %v273
        %v277 = vunpack.c.l.bf16 %v274
        %vm278 = vcmask 195584
        %v280 = vsel %vm278, %v271, 0
        %282 = vmatprep.subr.mxu0 0.0
        %283 = vmatpush1.msra.mxu0 %v275
        %284 = vmatprep.subr.mxu0 0.0
        %285 = vmatpush1.msra.mxu0 %v276
        %286 = vmatprep.subr.mxu0 0.0
        %287 = vmatpush1.msra.mxu0 %v277
        %288 = vmatprep.subr.mxu0 0.0
        %289 = vmatpush1.msra.mxu0 0.0
        %290 = vmatprep.subr.mxu0 0.0
        %291 = vmatpush1.msra.mxu0 0.0
        %292 = vmatprep.subr.mxu0 0.0
        %293 = vmatpush1.msra.mxu0 0.0
        %294 = vmatprep.subr.mxu0 0.0
        %295 = vmatpush1.msra.mxu0 0.0
        %296 = vmatprep.subr.mxu0 0.0
        %297 = vmatpush1.msra.mxu0 0.0
        %298 = vmatprep.subr.mxu0 0.0
        %299 = vmatpush1.msra.mxu0 0.0
        %300 = vmatprep.subr.mxu0 0.0
        %301 = vmatpush1.msra.mxu0 0.0
        %302 = vmatprep.subr.mxu0 0.0
        %303 = vmatpush1.msra.mxu0 0.0
        %304 = vmatprep.subr.mxu0 0.0
        %305 = vmatpush1.msra.mxu0 0.0
        %306 = vmatprep.subr.mxu0 0.0
        %307 = vmatpush1.msra.mxu0 0.0
        %308 = vmatprep.subr.mxu0 0.0
        %309 = vmatpush1.msra.mxu0 0.0
        %310 = vmatprep.subr.mxu0 0.0
        %311 = vmatpush1.msra.mxu0 0.0
        %312 = vmatprep.subr.mxu0 0.0
        %313 = vmatpush1.msra.mxu0 0.0
        %314 = vmatprep.subr.mxu0 0.0
        %315 = vmatpush1.msra.mxu0 0.0
        %316 = vmatprep.subr.mxu0 0.0
        %317 = vmatpush1.msra.mxu0 0.0
        %318 = vmatprep.subr.mxu0 0.0
        %319 = vmatpush1.msra.mxu0 0.0
        %320 = vmatprep.subr.mxu0 0.0
        %321 = vmatpush1.msra.mxu0 0.0
        %322 = vmatprep.subr.mxu0 0.0
        %323 = vmatpush1.msra.mxu0 0.0
        %324 = vmatprep.subr.mxu0 0.0
        %325 = vmatpush1.msra.mxu0 0.0
        %326 = vmatprep.subr.mxu0 0.0
        %327 = vmatpush1.msra.mxu0 0.0
        %328 = vmatprep.subr.mxu0 0.0
        %329 = vmatpush1.msra.mxu0 0.0
        %330 = vmatprep.subr.mxu0 0.0
        %331 = vmatpush1.msra.mxu0 0.0
        %332 = vmatprep.subr.mxu0 0.0
        %333 = vmatpush1.msra.mxu0 0.0
        %334 = vmatprep.subr.mxu0 0.0
        %335 = vmatpush1.msra.mxu0 0.0
        %336 = vmatprep.subr.mxu0 0.0
        %337 = vmatpush1.msra.mxu0 0.0
        %338 = vmatprep.subr.mxu0 0.0
        %339 = vmatpush1.msra.mxu0 0.0
        %340 = vmatprep.subr.mxu0 0.0
        %341 = vmatpush1.msra.mxu0 0.0
        %342 = vmatprep.subr.mxu0 0.0
        %343 = vmatpush1.msra.mxu0 0.0
        %344 = vmatprep.subr.mxu0 0.0
        %345 = vmatpush1.msra.mxu0 0.0
        %346 = vmatprep.mubr.f32.mxu0 0.0
        %347 = vmatmul.mubr.f32.gmra.mrb[0].mxu0 %v280
        %v348 = vpop.f32.mrb[0].mxu0
        %v349 = vadd.f32 0.0, %v348
        %v350 = vpop.f32.mrb[0].mxu0
        %351 = vdwg.mxu0
        %v352 = vmul.f32 %v349, 1.442695
        %v353 = vpow.pop %v352
        %v354 = vld [vmem:[%s262] sm:$0x1]
        %v356 = vlaneseq
        %v357 = vshrl.u32 %v356, 7
        %v358 = vsub.s32 0, %v357
        %v359 = vrot.slane %v354, %v358
        %v361 = vmul.f32 %v353, %v359
        %362 = vst [vmem:[%s270] sm:$0xff] %v361
        %p363 = scmp.lt.s32.totalorder %s19, 0
        %s364 = scalar_select %p363, %s19, 0
        %p365 = scmp.lt.s32.totalorder %s18, 1
        %s366 = scalar_select %p365, %s18, 1
        %s367 = smul.addr %s364, 2
        %s368 = sadd.s32 %s366, %s367
        %s369 = smul.addr %s368, 8
        %s370 = scalar_lea.vmem %s3, %s369
        // Predicated region
        $region74: #{motif_collection_forward.1} parent=68 // pred_check
          %p371 = pneg %p124
        $region75: #{motif_collection_forward.1} parent=68 // pred_check_branch
          %373 = sbr.rel (%p371) target = $region77
        $region76: #{motif_collection_forward.1} parent=68 // pred_region
          _
        $region77: #{motif_collection_forward.1} parent=68 // pred_fallthru
          _
      $region69: #{motif_collection_forward.1} parent=5 // pred_fallthru
        _
      %p374 = scmp.le.s32.totalorder 2, %s9
      // Predicated region
      $region78: #{motif_collection_forward.1} parent=5 // pred_check
        %p375 = pneg %p374
      $region79: #{motif_collection_forward.1} parent=5 // pred_check_branch
        %377 = sbr.rel (%p375) target = $region81
      $region80: #{motif_collection_forward.1} parent=5 // pred_region
        %s378 = ssub.s32 %s9, 2
        // Predicated region
        $region82: #{motif_collection_forward.1} parent=80 // pred_check
          %p379 = pneg %p130
        $region83: #{motif_collection_forward.1} parent=80 // pred_check_branch
          %381 = sbr.rel (%p379) target = $region85
        $region84: #{motif_collection_forward.1} parent=80 // pred_region
          %p382 = scmp.lt.s32.totalorder %s21, 0
          %s383 = scalar_select %p382, %s21, 0
          %p384 = scmp.lt.s32.totalorder %s20, 1
          %s385 = scalar_select %p384, %s20, 1
          %s386 = smul.addr %s383, 2
          %s387 = sadd.s32 %s385, %s386
          %s388 = smul.addr %s387, 8
          %s389 = scalar_lea.vmem %s3, %s388
        $region85: #{motif_collection_forward.1} parent=80 // pred_fallthru
          _
      $region81: #{motif_collection_forward.1} parent=5 // pred_fallthru
        _
    $region6: #{motif_collection_forward.1} parent=1 // loop_footer
      %s13 = sadd.s32 1, %s9
    $region7: #{motif_collection_forward.1} parent=1 // loop_footer_branch
      %8 = sbr.rel target = $region3
    $region8: #{motif_collection_forward.1} parent=1 // loop_exit
      _

</llo_original>
